<compile_context>
chip_gen: v7x
topology: tpu7x:2x2x1
jax: 0.10.0
libtpu: 0.0.40
codegen_flags: <defaults>
</compile_context>

<pallas_src>
import functools

import jax
import jax.numpy as jnp
from jax.experimental import pallas as pl
from jax.experimental.pallas import tpu as pltpu


_TB_MAX = 1024     # batch-tile cap; streaming reaches ~86% of HBM roofline at 1024
_LANE = 128        # lane width: hidden dim padded to this (VMEM-resident weights)
_SUBLANE = 8       # sublane width: batch tile / action dim padded to this


def _round_up(x: int, m: int) -> int:
    return ((x + m - 1) // m) * m


def _pick_batch_tile(batch: int) -> int:
    """Batch tile giving >= 2 (even, where possible) grid steps so v7x's two
    TensorCores both get work; capped at _TB_MAX for v5e/v6e streaming."""
    if batch <= 2 * _SUBLANE:
        return _round_up(batch, _SUBLANE)
    tb = min(_TB_MAX, _round_up(-(-batch // 2), _SUBLANE))
    steps = -(-batch // tb)
    if steps > 2 and steps % 2 == 1:
        # Nudge to an even step count (balanced split across 2 TCs on v7x).
        tb = _round_up(-(-batch // (steps + 1)), _SUBLANE)
    return tb


def _dqn_kernel(x_ref, w1_ref, b1_ref, w2_ref, b2_ref, out_ref):
    """Fused MLP block:  q = relu(x @ W1 + b1) @ W2 + b2   (all f32).

    x_ref:   (TB, S)        f32  streamed activations
    w1_ref:  (S, H_pad)     f32  VMEM-resident across the whole grid
    b1_ref:  (1, H_pad)     f32
    w2_ref:  (H_pad, A_pad) f32
    b2_ref:  (1, A_pad)     f32
    out_ref: (TB, A_pad)    f32  compact (A_pad = 8) -> tiny HBM writeback
    """
    h = jnp.dot(x_ref[...], w1_ref[...], preferred_element_type=jnp.float32)
    h = jnp.maximum(h + b1_ref[...], 0.0)
    q = jnp.dot(h, w2_ref[...], preferred_element_type=jnp.float32)
    out_ref[...] = q + b2_ref[...]


def prepare_params(w1, b1, w2, b2):
    """Zero-pad hidden dim to a lane multiple and action dim to a sublane
    multiple; everything stays f32 (exact parity with the PyTorch reference).

    Zero padding is semantics-preserving: padded hidden units get bias 0 ->
    relu(0) = 0 -> contribute nothing through zero-padded W2 rows; padded Q
    columns are sliced off by the wrapper.
    """
    S, H = w1.shape
    A = w2.shape[1]
    Hp = _round_up(H, _LANE)
    Ap = _round_up(max(A, _SUBLANE), _SUBLANE)
    f32 = jnp.float32
    w1p = jnp.zeros((S, Hp), f32).at[:, :H].set(w1.astype(f32))
    b1p = jnp.zeros((1, Hp), f32).at[:, :H].set(b1.reshape(1, -1).astype(f32))
    w2p = jnp.zeros((Hp, Ap), f32).at[:H, :A].set(w2.astype(f32))
    b2p = jnp.zeros((1, Ap), f32).at[:, :A].set(b2.reshape(1, -1).astype(f32))
    return w1p, b1p, w2p, b2p


@functools.partial(jax.jit, static_argnames=("action_dim",))
def dqn_forward(state, w1p, b1p, w2p, b2p, *, action_dim):
    """state: (B, state_dim) f32; padded f32 params from prepare_params.

    Returns q_values: (B, action_dim) f32.
    """
    B, S = state.shape
    Hp = w1p.shape[1]
    Ap = w2p.shape[1]

    tb = _pick_batch_tile(B)
    b_pad = _round_up(B, tb)
    if b_pad != B:
        state = jnp.pad(state, ((0, b_pad - B), (0, 0)))
    grid = (b_pad // tb,)

    itemsize = 4  # f32 everywhere
    cost = pl.CostEstimate(
        flops=2 * b_pad * (S * Hp + Hp * Ap),
        transcendentals=0,
        bytes_accessed=itemsize * (b_pad * S            # streamed input
                                   + S * Hp + Hp        # fc1 weights + bias
                                   + Hp * Ap + Ap       # fc2 weights + bias
                                   + b_pad * Ap),       # compact output
    )

    def _resident(shape):
        # Constant block index -> weights/biases stay VMEM-resident; single-buffered.
        return pl.BlockSpec(shape, lambda i: (0, 0), pipeline_mode=pl.Buffered(1))

    out_q = pl.pallas_call(
        _dqn_kernel,
        out_shape=jax.ShapeDtypeStruct((b_pad, Ap), jnp.float32),
        grid=grid,
        in_specs=[
            pl.BlockSpec((tb, S), lambda i: (i, 0)),   # streamed activations
            _resident((S, Hp)),
            _resident((1, Hp)),
            _resident((Hp, Ap)),
            _resident((1, Ap)),
        ],
        out_specs=pl.BlockSpec((tb, Ap), lambda i: (i, 0)),
        compiler_params=pltpu.CompilerParams(
            dimension_semantics=("parallel",),          # v7x: batch split across 2 TCs
        ),
        cost_estimate=cost,
    )(state, w1p, b1p, w2p, b2p)

    # Compact (b_pad, 8) output -> this slice is near-free (no 512 B strided rows).
    return out_q[:B, :action_dim]


def init_dqn_params(key, state_dim, hidden_dim, action_dim):
    """PyTorch nn.Linear default init: U(-1/sqrt(fan_in), 1/sqrt(fan_in))."""
    k1, k2, k3, k4 = jax.random.split(key, 4)
    bound1 = 1.0 / jnp.sqrt(jnp.float32(state_dim))
    bound2 = 1.0 / jnp.sqrt(jnp.float32(hidden_dim))
    # Stored as (in, out) == transpose of PyTorch's (out, in).
    w1 = jax.random.uniform(k1, (state_dim, hidden_dim), jnp.float32, -bound1, bound1)
    b1 = jax.random.uniform(k2, (1, hidden_dim), jnp.float32, -bound1, bound1)
    w2 = jax.random.uniform(k3, (hidden_dim, action_dim), jnp.float32, -bound2, bound2)
    b2 = jax.random.uniform(k4, (1, action_dim), jnp.float32, -bound2, bound2)
    return w1, b1, w2, b2


if __name__ == "__main__":
    state_dim = 16
    hidden_dim = 32
    action_dim = 4

    key = jax.random.PRNGKey(0)
    k_params, k_small, k_big = jax.random.split(key, 3)

    w1, b1, w2, b2 = init_dqn_params(k_params, state_dim, hidden_dim, action_dim)
    w1p, b1p, w2p, b2p = prepare_params(w1, b1, w2, b2)

    # Pure-JAX f32 reference (same math as the PyTorch forward).
    def ref_fn(s):
        return jnp.maximum(s @ w1 + b1, 0.0) @ w2 + b2

    # Case 1: tiny batch (module-scale smoke test; exercises the padding path).
    state_small = jax.random.normal(k_small, (2, state_dim), jnp.float32)
    q_small = jax.block_until_ready(
        dqn_forward(state_small, w1p, b1p, w2p, b2p, action_dim=action_dim))
    assert q_small.shape == (2, action_dim)
    assert jnp.allclose(q_small, ref_fn(state_small), atol=2e-2, rtol=2e-2), \
        "small-batch mismatch vs reference"

    # Case 2: replay-buffer-sized batch (multi-step batch grid: 2 even steps).
    state_big = jax.random.normal(k_big, (1024, state_dim), jnp.float32)
    q_big = jax.block_until_ready(
        dqn_forward(state_big, w1p, b1p, w2p, b2p, action_dim=action_dim))
    assert q_big.shape == (1024, action_dim)
    assert jnp.allclose(q_big, ref_fn(state_big), atol=2e-2, rtol=2e-2), \
        "large-batch mismatch vs reference"

    # TODO(synk): select_action's epsilon-greedy RNG / argmax is host-side policy
    # logic; the forward spec returns full Q-values, so argmax fusion is left out.
    print("KERNEL_OK")
</pallas_src>

<mosaic_0001>
module attributes {stable_mosaic.version = 11 : i64} {
  func.func @_dqn_kernel(%arg0: i32, %arg1: memref<8x16xf32, #tpu.memory_space<vmem>>, %arg2: memref<16x128xf32, #tpu.memory_space<vmem>>, %arg3: memref<1x128xf32, #tpu.memory_space<vmem>>, %arg4: memref<128x8xf32, #tpu.memory_space<vmem>>, %arg5: memref<1x8xf32, #tpu.memory_space<vmem>>, %arg6: memref<8x8xf32, #tpu.memory_space<vmem>>) attributes {dimension_semantics = [#tpu.dimension_semantics<parallel>], iteration_bounds = array<i64: 1>, scalar_prefetch = 0 : i64, scratch_operands = 0 : i64, tpu.core_type = #tpu.core_type<tc>, window_params = [{transform_indices = @transform_0, window_bounds = array<i64: 8, 16>}, {pipeline_mode = #tpu.pipeline_mode<synchronous>, transform_indices = @transform_1, window_bounds = array<i64: 16, 128>}, {pipeline_mode = #tpu.pipeline_mode<synchronous>, transform_indices = @transform_2, window_bounds = array<i64: 1, 128>}, {pipeline_mode = #tpu.pipeline_mode<synchronous>, transform_indices = @transform_3, window_bounds = array<i64: 128, 8>}, {pipeline_mode = #tpu.pipeline_mode<synchronous>, transform_indices = @transform_4, window_bounds = array<i64: 1, 8>}, {transform_indices = @transform_5, window_bounds = array<i64: 8, 8>}]} {
    %c0 = arith.constant 0 : index
    %c0_0 = arith.constant 0 : index
    %0 = vector.load %arg1[%c0, %c0_0] : memref<8x16xf32, #tpu.memory_space<vmem>>, vector<8x16xf32>
    %c0_1 = arith.constant 0 : index
    %c0_2 = arith.constant 0 : index
    %1 = vector.load %arg2[%c0_1, %c0_2] : memref<16x128xf32, #tpu.memory_space<vmem>>, vector<16x128xf32>
    %cst = arith.constant dense<0.000000e+00> : vector<8x128xf32>
    %2 = tpu.matmul %0, %1, %cst {dimension_numbers = #tpu.dot_dimension_numbers<[1], [0], [0], [1], [0, 0, 1, 1], [], []>} : vector<8x16xf32>, vector<16x128xf32>, vector<8x128xf32> -> vector<8x128xf32>
    %c0_3 = arith.constant 0 : index
    %c0_4 = arith.constant 0 : index
    %3 = vector.load %arg3[%c0_3, %c0_4] : memref<1x128xf32, #tpu.memory_space<vmem>>, vector<1x128xf32>
    %4 = vector.broadcast %3 : vector<1x128xf32> to vector<8x128xf32>
    %5 = arith.addf %2, %4 : vector<8x128xf32>
    %cst_5 = arith.constant 0.000000e+00 : f32
    %6 = vector.broadcast %cst_5 : f32 to vector<8x128xf32>
    %7 = arith.maximumf %5, %6 : vector<8x128xf32>
    %c0_6 = arith.constant 0 : index
    %c0_7 = arith.constant 0 : index
    %8 = vector.load %arg4[%c0_6, %c0_7] : memref<128x8xf32, #tpu.memory_space<vmem>>, vector<128x8xf32>
    %cst_8 = arith.constant dense<0.000000e+00> : vector<8x8xf32>
    %9 = tpu.matmul %7, %8, %cst_8 {dimension_numbers = #tpu.dot_dimension_numbers<[1], [0], [0], [1], [0, 0, 1, 1], [], []>} : vector<8x128xf32>, vector<128x8xf32>, vector<8x8xf32> -> vector<8x8xf32>
    %c0_9 = arith.constant 0 : index
    %c0_10 = arith.constant 0 : index
    %10 = vector.load %arg5[%c0_9, %c0_10] : memref<1x8xf32, #tpu.memory_space<vmem>>, vector<1x8xf32>
    %11 = vector.broadcast %10 : vector<1x8xf32> to vector<8x8xf32>
    %12 = arith.addf %9, %11 : vector<8x8xf32>
    %c0_11 = arith.constant 0 : index
    %c0_12 = arith.constant 0 : index
    %13 = vector.load %arg6[%c0_11, %c0_12] : memref<8x8xf32, #tpu.memory_space<vmem>>, vector<8x8xf32>
    tpu.vector_store %arg6[%c0_11, %c0_12], %12 {strides = array<i32>} : memref<8x8xf32, #tpu.memory_space<vmem>>, vector<8x8xf32>,
    return
  }
  func.func @transform_0(%arg0: i32) -> (i32, i32) {
    %c0_i32 = arith.constant 0 : i32
    %c0_i32_0 = arith.constant 0 : i32
    return %arg0, %c0_i32 : i32, i32
  }
  func.func @transform_1(%arg0: i32) -> (i32, i32) {
    %c0_i32 = arith.constant 0 : i32
    %c0_i32_0 = arith.constant 0 : i32
    %c0_i32_1 = arith.constant 0 : i32
    return %c0_i32, %c0_i32_0 : i32, i32
  }
  func.func @transform_2(%arg0: i32) -> (i32, i32) {
    %c0_i32 = arith.constant 0 : i32
    %c0_i32_0 = arith.constant 0 : i32
    %c0_i32_1 = arith.constant 0 : i32
    return %c0_i32, %c0_i32_0 : i32, i32
  }
  func.func @transform_3(%arg0: i32) -> (i32, i32) {
    %c0_i32 = arith.constant 0 : i32
    %c0_i32_0 = arith.constant 0 : i32
    %c0_i32_1 = arith.constant 0 : i32
    return %c0_i32, %c0_i32_0 : i32, i32
  }
  func.func @transform_4(%arg0: i32) -> (i32, i32) {
    %c0_i32 = arith.constant 0 : i32
    %c0_i32_0 = arith.constant 0 : i32
    %c0_i32_1 = arith.constant 0 : i32
    return %c0_i32, %c0_i32_0 : i32, i32
  }
  func.func @transform_5(%arg0: i32) -> (i32, i32) {
    %c0_i32 = arith.constant 0 : i32
    %c0_i32_0 = arith.constant 0 : i32
    return %arg0, %c0_i32 : i32, i32
  }
}

</mosaic_0001>

<llo_original>
// kernel: dqn_forward.1
$region0: #{dqn_forward.1}
  #allocation0 [shape = 'u32[]', space=smem, size = 0x4, offset = 0x4, fixed_abs, tag = 'smem constant byte address 0x4 - core index']
  #allocation1 [shape = 'u32[144,128]{1,0:T(1,128)}', space=vmem, size = 0x12000, scoped, tag = 'internal scratch']
  %s0 = inlined_call_operand.vmem [shape: f32[8,16], index: 0, kind: input, shape index: {}]
  %s1 = inlined_call_operand.vmem [shape: f32[16,128], index: 1, kind: input, shape index: {}]
  %s2 = inlined_call_operand.vmem [shape: f32[1,128], index: 2, kind: input, shape index: {}]
  %s3 = inlined_call_operand.vmem [shape: f32[128,8], index: 3, kind: input, shape index: {}]
  %s4 = inlined_call_operand.vmem [shape: f32[1,8], index: 4, kind: input, shape index: {}]
  %s5 = inlined_call_operand.vmem [shape: f32[8,8], index: 5, kind: output, shape index: {}]
  %s6 = sld [smem:[#allocation0]]
  $region30: #{dqn_forward.1} parent=0
    _
  %s8 = ssub.s32 1, %s6
  %s9 = scalar_select 0, %s8, %s6
  // Predicated region
  $region2: #{dqn_forward.1} parent=0 // pred_check
    _
  $region3: #{dqn_forward.1} parent=0 // pred_check_branch
    %11 = sbr.rel (0) target = $region5
  $region4: #{dqn_forward.1} parent=0 // pred_region
    _
  $region5: #{dqn_forward.1} parent=0 // pred_fallthru
    _
  // Predicated region
  $region6: #{dqn_forward.1} parent=0 // pred_check
    _
  $region7: #{dqn_forward.1} parent=0 // pred_check_branch
    %13 = sbr.rel (0) target = $region9
  $region8: #{dqn_forward.1} parent=0 // pred_region
    _
  $region9: #{dqn_forward.1} parent=0 // pred_fallthru
    _
  // Predicated region
  $region10: #{dqn_forward.1} parent=0 // pred_check
    _
  $region11: #{dqn_forward.1} parent=0 // pred_check_branch
    %15 = sbr.rel (0) target = $region13
  $region12: #{dqn_forward.1} parent=0 // pred_region
    _
  $region13: #{dqn_forward.1} parent=0 // pred_fallthru
    _
  // Predicated region
  $region14: #{dqn_forward.1} parent=0 // pred_check
    _
  $region15: #{dqn_forward.1} parent=0 // pred_check_branch
    %17 = sbr.rel (0) target = $region17
  $region16: #{dqn_forward.1} parent=0 // pred_region
    _
  $region17: #{dqn_forward.1} parent=0 // pred_fallthru
    _
  // Predicated region
  $region18: #{dqn_forward.1} parent=0 // pred_check
    _
  $region19: #{dqn_forward.1} parent=0 // pred_check_branch
    %19 = sbr.rel (0) target = $region21
  $region20: #{dqn_forward.1} parent=0 // pred_region
    _
  $region21: #{dqn_forward.1} parent=0 // pred_fallthru
    _
  %v20 = vld [vmem:[%s0] sm:$0xff]
  %v21 = vld [vmem:[%s1] sm:$0xff]
  %v22 = vld [vmem:[%s1 + $0x8] sm:$0xff]
  %v23 = vld [vmem:[%s2] sm:$0x1]
  %v25 = vlaneseq
  %v26 = vshrl.u32 %v25, 7
  %v27 = vsub.s32 0, %v26
  %v28 = vrot.slane %v23, %v27
  %vm30 = vcmask 130048
  %v32 = vsel %vm30, %v20, 0
  %34 = vmatprep.subr.mxu0 0.0
  %35 = vmatpush1.msra.mxu0 %v21
  %36 = vmatprep.subr.mxu0 0.0
  %37 = vmatpush1.msra.mxu0 %v22
  %38 = vmatprep.subr.mxu0 0.0
  %39 = vmatpush1.msra.mxu0 0.0
  %40 = vmatprep.subr.mxu0 0.0
  %41 = vmatpush1.msra.mxu0 0.0
  %42 = vmatprep.subr.mxu0 0.0
  %43 = vmatpush1.msra.mxu0 0.0
  %44 = vmatprep.subr.mxu0 0.0
  %45 = vmatpush1.msra.mxu0 0.0
  %46 = vmatprep.subr.mxu0 0.0
  %47 = vmatpush1.msra.mxu0 0.0
  %48 = vmatprep.subr.mxu0 0.0
  %49 = vmatpush1.msra.mxu0 0.0
  %50 = vmatprep.subr.mxu0 0.0
  %51 = vmatpush1.msra.mxu0 0.0
  %52 = vmatprep.subr.mxu0 0.0
  %53 = vmatpush1.msra.mxu0 0.0
  %54 = vmatprep.subr.mxu0 0.0
  %55 = vmatpush1.msra.mxu0 0.0
  %56 = vmatprep.subr.mxu0 0.0
  %57 = vmatpush1.msra.mxu0 0.0
  %58 = vmatprep.subr.mxu0 0.0
  %59 = vmatpush1.msra.mxu0 0.0
  %60 = vmatprep.subr.mxu0 0.0
  %61 = vmatpush1.msra.mxu0 0.0
  %62 = vmatprep.subr.mxu0 0.0
  %63 = vmatpush1.msra.mxu0 0.0
  %64 = vmatprep.subr.mxu0 0.0
  %65 = vmatpush1.msra.mxu0 0.0
  %66 = vmatprep.subr.mxu0 0.0
  %67 = vmatpush1.msra.mxu0 0.0
  %68 = vmatprep.subr.mxu0 0.0
  %69 = vmatpush1.msra.mxu0 0.0
  %70 = vmatprep.subr.mxu0 0.0
  %71 = vmatpush1.msra.mxu0 0.0
  %72 = vmatprep.subr.mxu0 0.0
  %73 = vmatpush1.msra.mxu0 0.0
  %74 = vmatprep.subr.mxu0 0.0
  %75 = vmatpush1.msra.mxu0 0.0
  %76 = vmatprep.subr.mxu0 0.0
  %77 = vmatpush1.msra.mxu0 0.0
  %78 = vmatprep.subr.mxu0 0.0
  %79 = vmatpush1.msra.mxu0 0.0
  %80 = vmatprep.subr.mxu0 0.0
  %81 = vmatpush1.msra.mxu0 0.0
  %82 = vmatprep.subr.mxu0 0.0
  %83 = vmatpush1.msra.mxu0 0.0
  %84 = vmatprep.subr.mxu0 0.0
  %85 = vmatpush1.msra.mxu0 0.0
  %86 = vmatprep.subr.mxu0 0.0
  %87 = vmatpush1.msra.mxu0 0.0
  %88 = vmatprep.subr.mxu0 0.0
  %89 = vmatpush1.msra.mxu0 0.0
  %90 = vmatprep.subr.mxu0 0.0
  %91 = vmatpush1.msra.mxu0 0.0
  %92 = vmatprep.subr.mxu0 0.0
  %93 = vmatpush1.msra.mxu0 0.0
  %94 = vmatprep.subr.mxu0 0.0
  %95 = vmatpush1.msra.mxu0 0.0
  %96 = vmatprep.subr.mxu0 0.0
  %97 = vmatpush1.msra.mxu0 0.0
  %98 = vmatprep.mubr.f32.mxu0 0.0
  %99 = vmatmul.mubr.f32.gmra.mrb[0].mxu0 %v32
  %v100 = vpop.f32.mrb[0].mxu0
  %v101 = vadd.f32 %v28, %v100
  %v102 = vpop.f32.mrb[0].mxu0
  %103 = vdwg.mxu0
  %v104 = vmax.f32 %v101, 0.0
  %v105 = vld [vmem:[%s3] sm:$0xff]
  %v106 = vld [vmem:[%s3 + $0x8] sm:$0xff]
  %v107 = vld [vmem:[%s3 + $0x10] sm:$0xff]
  %v108 = vld [vmem:[%s3 + $0x18] sm:$0xff]
  %v109 = vld [vmem:[%s3 + $0x20] sm:$0xff]
  %v110 = vld [vmem:[%s3 + $0x28] sm:$0xff]
  %v111 = vld [vmem:[%s3 + $0x30] sm:$0xff]
  %v112 = vld [vmem:[%s3 + $0x38] sm:$0xff]
  %v113 = vld [vmem:[%s3 + $0x40] sm:$0xff]
  %v114 = vld [vmem:[%s3 + $0x48] sm:$0xff]
  %v115 = vld [vmem:[%s3 + $0x50] sm:$0xff]
  %v116 = vld [vmem:[%s3 + $0x58] sm:$0xff]
  %v117 = vld [vmem:[%s3 + $0x60] sm:$0xff]
  %v118 = vld [vmem:[%s3 + $0x68] sm:$0xff]
  %v119 = vld [vmem:[%s3 + $0x70] sm:$0xff]
  %v120 = vld [vmem:[%s3 + $0x78] sm:$0xff]
  %v121 = vld [vmem:[%s4] sm:$0x1]
  %v123 = vlaneseq
  %v124 = vshrl.u32 %v123, 7
  %v125 = vsub.s32 0, %v124
  %v126 = vrot.slane %v121, %v125
  %128 = vmatprep.subr.mxu0 0.0
  %129 = vmatpush1.msra.mxu0 %v105
  %130 = vmatprep.subr.mxu0 0.0
  %131 = vmatpush1.msra.mxu0 %v106
  %132 = vmatprep.subr.mxu0 0.0
  %133 = vmatpush1.msra.mxu0 %v107
  %134 = vmatprep.subr.mxu0 0.0
  %135 = vmatpush1.msra.mxu0 %v108
  %136 = vmatprep.subr.mxu0 0.0
  %137 = vmatpush1.msra.mxu0 %v109
  %138 = vmatprep.subr.mxu0 0.0
  %139 = vmatpush1.msra.mxu0 %v110
  %140 = vmatprep.subr.mxu0 0.0
  %141 = vmatpush1.msra.mxu0 %v111
  %142 = vmatprep.subr.mxu0 0.0
  %143 = vmatpush1.msra.mxu0 %v112
  %144 = vmatprep.subr.mxu0 0.0
  %145 = vmatpush1.msra.mxu0 %v113
  %146 = vmatprep.subr.mxu0 0.0
  %147 = vmatpush1.msra.mxu0 %v114
  %148 = vmatprep.subr.mxu0 0.0
  %149 = vmatpush1.msra.mxu0 %v115
  %150 = vmatprep.subr.mxu0 0.0
  %151 = vmatpush1.msra.mxu0 %v116
  %152 = vmatprep.subr.mxu0 0.0
  %153 = vmatpush1.msra.mxu0 %v117
  %154 = vmatprep.subr.mxu0 0.0
  %155 = vmatpush1.msra.mxu0 %v118
  %156 = vmatprep.subr.mxu0 0.0
  %157 = vmatpush1.msra.mxu0 %v119
  %158 = vmatprep.subr.mxu0 0.0
  %159 = vmatpush1.msra.mxu0 %v120
  %160 = vmatprep.subr.mxu0 0.0
  %161 = vmatpush1.msra.mxu0 0.0
  %162 = vmatprep.subr.mxu0 0.0
  %163 = vmatpush1.msra.mxu0 0.0
  %164 = vmatprep.subr.mxu0 0.0
  %165 = vmatpush1.msra.mxu0 0.0
  %166 = vmatprep.subr.mxu0 0.0
  %167 = vmatpush1.msra.mxu0 0.0
  %168 = vmatprep.subr.mxu0 0.0
  %169 = vmatpush1.msra.mxu0 0.0
  %170 = vmatprep.subr.mxu0 0.0
  %171 = vmatpush1.msra.mxu0 0.0
  %172 = vmatprep.subr.mxu0 0.0
  %173 = vmatpush1.msra.mxu0 0.0
  %174 = vmatprep.subr.mxu0 0.0
  %175 = vmatpush1.msra.mxu0 0.0
  %176 = vmatprep.subr.mxu0 0.0
  %177 = vmatpush1.msra.mxu0 0.0
  %178 = vmatprep.subr.mxu0 0.0
  %179 = vmatpush1.msra.mxu0 0.0
  %180 = vmatprep.subr.mxu0 0.0
  %181 = vmatpush1.msra.mxu0 0.0
  %182 = vmatprep.subr.mxu0 0.0
  %183 = vmatpush1.msra.mxu0 0.0
  %184 = vmatprep.subr.mxu0 0.0
  %185 = vmatpush1.msra.mxu0 0.0
  %186 = vmatprep.subr.mxu0 0.0
  %187 = vmatpush1.msra.mxu0 0.0
  %188 = vmatprep.subr.mxu0 0.0
  %189 = vmatpush1.msra.mxu0 0.0
  %190 = vmatprep.subr.mxu0 0.0
  %191 = vmatpush1.msra.mxu0 0.0
  %192 = vmatprep.mubr.f32.mxu0 0.0
  %193 = vmatmul.mubr.f32.gmra.mrb[0].mxu0 %v104
  %v194 = vpop.f32.mrb[0].mxu0
  %v195 = vadd.f32 %v126, %v194
  %v196 = vpop.f32.mrb[0].mxu0
  %197 = vdwg.mxu0
  %vm198 = vcmask 64512
  %199 = vst.msk [vmem:[%s5] sm:$0xff] %vm198, %v195
  // Predicated region
  $region22: #{dqn_forward.1} parent=0 // pred_check
    _
  $region23: #{dqn_forward.1} parent=0 // pred_check_branch
    %201 = sbr.rel (0) target = $region25
  $region24: #{dqn_forward.1} parent=0 // pred_region
    _
  $region25: #{dqn_forward.1} parent=0 // pred_fallthru
    _
  // Predicated region
  $region26: #{dqn_forward.1} parent=0 // pred_check
    _
  $region27: #{dqn_forward.1} parent=0 // pred_check_branch
    %203 = sbr.rel (0) target = $region29
  $region28: #{dqn_forward.1} parent=0 // pred_region
    _
  $region29: #{dqn_forward.1} parent=0 // pred_fallthru
    _

</llo_original>
